<compile_context>
chip_gen: v5e
topology: v5e:2x2
jax: 0.10.0
libtpu: 0.0.40
codegen_flags: <defaults>
</compile_context>

<pallas_src>
import functools

import jax
import jax.numpy as jnp
from jax.experimental import pallas as pl
from jax.experimental.pallas import tpu as pltpu

LANE = 128
BLOCK_ROWS = 512            # 512 x 128 x 4 B = 256 KiB per f32 input block
NUM_CORES = 2               # outer 'parallel' grid axis (v7x megacore)


# ---------------------------------------------------------------------------
# Generic tiled matmul kernel (used by every GraphConvolution):  out = a @ b
# ---------------------------------------------------------------------------
def _matmul_kernel(a_ref, b_ref, o_ref, acc_ref, *, scale):
    k = pl.program_id(0)

    @pl.when(k == 0)
    def _init():
        acc_ref[...] = jnp.zeros_like(acc_ref)

    acc_ref[...] += jnp.dot(a_ref[...], b_ref[...],
                            preferred_element_type=jnp.float32)

    @pl.when(k == pl.num_programs(0) - 1)
    def _store():
        o_ref[...] = (acc_ref[...] * scale).astype(o_ref.dtype)


@functools.partial(jax.jit, static_argnames=("scale",))
def pallas_matmul(a, b, scale=1.0):
    m, k = a.shape
    k2, n = b.shape
    assert k == k2
    tk = 256 if (k > 256 and k % 256 == 0) else k
    grid = (k // tk,)
    return pl.pallas_call(
        functools.partial(_matmul_kernel, scale=float(scale)),
        out_shape=jax.ShapeDtypeStruct((m, n), jnp.float32),
        grid=grid,
        in_specs=[pl.BlockSpec((m, tk), lambda i: (0, i)),
                  pl.BlockSpec((tk, n), lambda i: (i, 0))],
        out_specs=pl.BlockSpec((m, n), lambda i: (0, 0)),
        scratch_shapes=[pltpu.VMEM((m, n), jnp.float32)],
        compiler_params=pltpu.CompilerParams(
            dimension_semantics=("arbitrary",)),
    )(a, b)


# ---------------------------------------------------------------------------
# Fused dropout + ReLU  (the `relu(dropout(x))` stage of ImageGCN.forward)
# ---------------------------------------------------------------------------
def _relu_dropout_kernel(x_ref, o_ref, *, rate, seed, apply_dropout):
    x = x_ref[...]
    if apply_dropout:
        m, n = x.shape
        # Stateless counter-based PRNG: murmur3 finaliser over element ids.
        # Pure jnp integer ops -> lowers on TPU Mosaic and in interpret mode.
        rid = jax.lax.broadcasted_iota(jnp.int32, (m, n), 0)
        cid = jax.lax.broadcasted_iota(jnp.int32, (m, n), 1)
        h = (rid * n + cid).astype(jnp.uint32)
        h = h ^ jnp.uint32(seed & 0xFFFFFFFF)
        h = h * jnp.uint32(0x9E3779B1)
        h = h ^ (h >> jnp.uint32(16))
        h = h * jnp.uint32(0x85EBCA6B)
        h = h ^ (h >> jnp.uint32(13))
        h = h * jnp.uint32(0xC2B2AE35)
        h = h ^ (h >> jnp.uint32(16))
        thresh = jnp.uint32(min(int(rate * 4294967296.0), 4294967295))
        keep = h >= thresh                                   # P(keep) = 1 - rate
        x = jnp.where(keep, x, jnp.float32(0.0)) * jnp.float32(1.0 / (1.0 - rate))
    o_ref[...] = jnp.maximum(x, jnp.float32(0.0))            # dropout, then ReLU


@functools.partial(jax.jit, static_argnames=("rate", "seed", "deterministic"))
def relu_dropout(x, rate=0.1, seed=0, deterministic=True):
    m, n = x.shape
    apply_dropout = (not deterministic) and rate > 0.0
    return pl.pallas_call(
        functools.partial(_relu_dropout_kernel, rate=float(rate),
                          seed=int(seed), apply_dropout=apply_dropout),
        out_shape=jax.ShapeDtypeStruct((m, n), x.dtype),
        grid=(1,),
        in_specs=[pl.BlockSpec((m, n), lambda i: (0, 0))],
        out_specs=pl.BlockSpec((m, n), lambda i: (0, 0)),
    )(x)


# ---------------------------------------------------------------------------
# GraphConvolution / MRGCN ('partly') / ImageGCN forward
# ---------------------------------------------------------------------------
def graph_convolution(x, weight, adj):
    """GraphConvolution.forward: support = x @ W ; out = adj @ support.
    A scalar `adj` (the MRGCN 'self' path) just scales the support."""
    # TODO(synk): optional bias of the reference GraphConvolution is omitted
    # (the dependent class body was not provided in the spec).
    if isinstance(adj, (int, float)):
        return pallas_matmul(x, weight, scale=float(adj))
    support = pallas_matmul(x, weight)
    return pallas_matmul(adj, support)


def mrgcn_dense_forward(fea_in, k, adj_mats, weights, selfweight=1.0):
    """MRGCN.forward, share_encoder='partly' branch (CNN encoder factored out)."""
    fea_out = fea_in[k:]
    fea = graph_convolution(fea_out, weights["self"], float(selfweight))
    for r, adj in adj_mats.items():
        fea = fea + graph_convolution(fea_in, weights[r], adj)
    return fea


def image_gcn_forward(fea_nodes, adj_mats2, adj_mats1, params, k=8,
                      dropout_rate=0.1, dropout_seed=0, deterministic=True):
    """ImageGCN.forward (share_encoder='partly')."""
    # TODO(synk): the CNN image encoder (MyAlexNet/ResNet/VGG/DenseNet
    # `.features`) is not re-implemented as a Pallas kernel; `fea_nodes` are
    # the per-node 1024-d features that encoder would produce.
    # TODO(synk): the reference passes the feature tensor itself as `k` to the
    # image layer (`self.imagelayer(fea, fea, adj_mats1)`), which cannot be
    # used to slice `fea_in[k:]`; k=0 (self path over all nodes) is used here.
    fea2 = mrgcn_dense_forward(fea_nodes, 0, adj_mats1, params["image"],
                               selfweight=1.0)
    fea2 = fea2.reshape(-1, 1024)
    fea2 = relu_dropout(fea2, rate=dropout_rate, seed=dropout_seed,
                        deterministic=deterministic)
    fea = mrgcn_dense_forward(fea2, k, adj_mats2, params["dense"],
                              selfweight=1.0)
    return fea


def init_imagegcn_params(key, relations, hid_dim=1024, out_dim=32):
    names = list(relations) + ["self"]
    keys = jax.random.split(key, 2 * len(names))
    params = {"image": {}, "dense": {}}
    for i, r in enumerate(names):
        params["image"][r] = 0.02 * jax.random.normal(
            keys[2 * i], (hid_dim, hid_dim), jnp.float32)
        params["dense"][r] = 0.02 * jax.random.normal(
            keys[2 * i + 1], (hid_dim, out_dim), jnp.float32)
    return params


# ---------------------------------------------------------------------------
# MatWithNALoss — masked BCE / MSE / L1 over the non-NA entries
# ---------------------------------------------------------------------------
# Stat slots of the (cores, 8, 128) per-lane partial-sum output:
#   0: sum(mask)                       3: sum(mask * t * softplus(-x))
#   1: sum(mask & (t == 0))            4: sum(mask * (1-t) * softplus(x))
#   2: sum(mask & (t outside [0,1]))   5: sum(mask * (x-t)^2)
#                                      6: sum(mask * |x-t|)       7: unused
def _make_stats_kernel(block_rows, compute_bce, compute_mse, compute_l1,
                       compute_viol):
    def kernel(n_ref, x_ref, t_ref, m_ref, out_ref):
        c = pl.program_id(0)
        j = pl.program_id(1)

        @pl.when(j == 0)
        def _init():
            out_ref[...] = jnp.zeros_like(out_ref)

        # Logical (unclamped) block id -> global element ids of this tile.
        blk = c * pl.num_programs(1) + j
        row0 = blk * block_rows
        rid = jax.lax.broadcasted_iota(jnp.int32, (block_rows, LANE), 0)
        cid = jax.lax.broadcasted_iota(jnp.int32, (block_rows, LANE), 1)
        eid = (row0 + rid) * LANE + cid
        valid = eid < n_ref[0]

        # Select before any arithmetic so ragged-tail garbage can't make NaNs.
        x = jnp.where(valid, x_ref[...], 0.0)
        t = jnp.where(valid, t_ref[...], 0.0)
        m = jnp.where(jnp.logical_and(valid, m_ref[...] != 0), 1.0, 0.0)

        def acc(slot, term):
            out_ref[0, slot:slot + 1, :] = (
                out_ref[0, slot:slot + 1, :]
                + jnp.sum(term, axis=0, keepdims=True))

        acc(0, m)                                             # n_mask
        if compute_viol:
            in_range = jnp.logical_and(t >= 0.0, t <= 1.0)    # NaN -> violation
            acc(2, m * jnp.logical_not(in_range).astype(jnp.float32))
        if compute_bce:
            acc(1, m * (t == 0.0).astype(jnp.float32))        # n_zero
            log_term = jnp.log1p(jnp.exp(-jnp.abs(x)))
            sp_pos = jnp.maximum(x, 0.0) + log_term           # softplus(x)
            sp_neg = jnp.maximum(-x, 0.0) + log_term          # softplus(-x)
            mt = m * t
            acc(3, mt * sp_neg)
            acc(4, (m - mt) * sp_pos)                         # m * (1 - t)
        if compute_mse or compute_l1:
            d = x - t
            if compute_mse:
                acc(5, m * d * d)
            if compute_l1:
                acc(6, m * jnp.abs(d))

    return kernel


@functools.partial(jax.jit, static_argnames=("losstype", "reduction",
                                             "block_rows", "num_cores"))
def mat_with_na_loss(inp, target, mask, losstype=None, reduction="mean",
                     pos_weight=None, block_rows=BLOCK_ROWS,
                     num_cores=NUM_CORES):
    """JAX/Pallas equivalent of MatWithNALoss.forward.

    The boolean NA-gather (`input[mask]`) of the reference is replaced by
    mask-weighted reductions, which yield identical sums / counts.
    """
    x = jnp.asarray(inp, jnp.float32).reshape(-1)
    t = jnp.asarray(target, jnp.float32).reshape(-1)
    n = x.shape[0]

    if jnp.ndim(mask) == 0:
        m = jnp.ones((n,), jnp.int8)            # scalar mask == "no masking"
    else:
        # TODO(synk): sparse-tensor masks (`mask.to_dense()`) are not handled.
        m = jnp.asarray(mask).reshape(-1)
        if m.dtype == jnp.bool_:
            m = m.astype(jnp.int8)
        elif m.dtype != jnp.int8:
            m = (m != 0).astype(jnp.int8)

    # Only pad to the 128-lane multiple (<=127 elems); block-tail raggedness
    # is masked inside the kernel against the true element count `n`.
    lane_pad = (-n) % LANE
    if lane_pad:
        x = jnp.pad(x, (0, lane_pad))
        t = jnp.pad(t, (0, lane_pad))
        m = jnp.pad(m, (0, lane_pad))
    rows = (n + lane_pad) // LANE
    x2 = x.reshape(rows, LANE)
    t2 = t.reshape(rows, LANE)
    m2 = m.reshape(rows, LANE)

    if not losstype:
        mode = "AUTO"
    elif losstype in ("BCE", "MSE", "L1"):
        mode = losstype
    else:
        raise ValueError("Undefined loss type.")
    compute_bce = mode in ("AUTO", "BCE")
    compute_mse = mode in ("AUTO", "MSE")
    compute_l1 = mode == "L1"
    compute_viol = mode == "AUTO"

    # Never request a block taller than the array (small inputs).
    br = min(block_rows, rows)
    num_blocks = max(1, pl.cdiv(rows, br))
    nc = max(1, min(num_cores, num_blocks))
    per_core = pl.cdiv(num_blocks, nc)

    def data_map(c, j, n_sref):
        # Clamp so no DMA starts fully out of bounds; the kernel masks the
        # duplicated tile out via the (unclamped) logical element ids.
        return (jnp.minimum(c * per_core + j, num_blocks - 1), 0)

    def out_map(c, j, n_sref):
        return (c, 0, 0)

    data_spec = pl.BlockSpec((br, LANE), data_map)
    kernel = _make_stats_kernel(br, compute_bce, compute_mse,
                                compute_l1, compute_viol)

    partials = pl.pallas_call(
        kernel,
        out_shape=jax.ShapeDtypeStruct((nc, 8, LANE), jnp.float32),
        grid_spec=pltpu.PrefetchScalarGridSpec(
            num_scalar_prefetch=1,
            grid=(nc, per_core),
            in_specs=[data_spec, data_spec, data_spec],
            out_specs=pl.BlockSpec((1, 8, LANE), out_map)),
        compiler_params=pltpu.CompilerParams(
            dimension_semantics=("parallel", "arbitrary")),
    )(jnp.asarray([n], jnp.int32), x2, t2, m2)

    stats = jnp.sum(partials, axis=(0, 2))
    n_mask, n_zero, n_viol = stats[0], stats[1], stats[2]
    s_pos, s_neg, s_mse, s_l1 = stats[3], stats[4], stats[5], stats[6]
    n_nonzero = n_mask - n_zero

    if pos_weight is not None:                       # works for traced scalars
        pw = jnp.asarray(pos_weight, jnp.float32)
    else:
        pw = n_zero / jnp.maximum(n_nonzero, 1.0)    # guard all-nonzero case
    bce_sum = pw * s_pos + s_neg

    if mode == "AUTO":
        # BCE iff every masked target lies in [0, 1] (NaN counts as violation)
        loss_sum = jnp.where(n_viol == 0.0, bce_sum, s_mse)
    elif mode == "BCE":
        loss_sum = bce_sum
    elif mode == "MSE":
        loss_sum = s_mse
    else:
        loss_sum = s_l1

    if reduction == "mean":
        return loss_sum / n_mask
    elif reduction == "sum":
        return loss_sum
    raise ValueError("Unsupported reduction.")


# ---------------------------------------------------------------------------
# Pure-JAX references (eager) for correctness checks
# ---------------------------------------------------------------------------
def _reference_loss(inp, target, mask, reduction="mean"):
    x = jnp.asarray(inp, jnp.float32).reshape(-1)
    t = jnp.asarray(target, jnp.float32).reshape(-1)
    sel = jnp.asarray(mask).reshape(-1) != 0
    x = x[sel]
    t = t[sel]
    pw = jnp.sum(t == 0) / jnp.sum(t != 0)
    is_bce = jnp.logical_and(jnp.all(t >= 0), jnp.all(t <= 1))
    sp = jax.nn.softplus
    bce = pw * t * sp(-x) + (1.0 - t) * sp(x)
    mse = (x - t) ** 2
    per_elem = jnp.where(is_bce, bce, mse)
    return jnp.mean(per_elem) if reduction == "mean" else jnp.sum(per_elem)


def _reference_forward(fea_nodes, adj_mats2, adj_mats1, params, k=8):
    hp = jax.lax.Precision.HIGHEST

    def gc(x, w, adj):
        sup = jnp.dot(x, w, precision=hp)
        if isinstance(adj, (int, float)):
            return adj * sup
        return jnp.dot(adj, sup, precision=hp)

    fea2 = gc(fea_nodes, params["image"]["self"], 1.0)
    for r, a in adj_mats1.items():
        fea2 = fea2 + gc(fea_nodes, params["image"][r], a)
    fea2 = jnp.maximum(fea2.reshape(-1, 1024), 0.0)   # eval-mode dropout = id
    out = gc(fea2[k:], params["dense"]["self"], 1.0)
    for r, a in adj_mats2.items():
        out = out + gc(fea2, params["dense"][r], a)
    return out


if __name__ == "__main__":
    key = jax.random.PRNGKey(0)
    k_feat, k_adj1, k_adj2, k_w, k_loss = jax.random.split(key, 5)

    N, HID, OUT, K = 16, 1024, 32, 8
    relations = ["r0", "r1"]

    fea_nodes = jax.random.normal(k_feat, (N, HID), jnp.float32)
    a1keys = jax.random.split(k_adj1, len(relations))
    a2keys = jax.random.split(k_adj2, len(relations))
    adj_mats1 = {r: jax.random.uniform(a1keys[i], (N, N), dtype=jnp.float32)
                 for i, r in enumerate(relations)}
    adj_mats2 = {r: jax.random.uniform(a2keys[i], (N - K, N), dtype=jnp.float32)
                 for i, r in enumerate(relations)}
    params = init_imagegcn_params(k_w, relations, HID, OUT)

    # --- ImageGCN forward (eval-mode dropout) + reference check --------------
    out = image_gcn_forward(fea_nodes, adj_mats2, adj_mats1, params, k=K,
                            deterministic=True)
    out = jax.block_until_ready(out)
    ref = _reference_forward(fea_nodes, adj_mats2, adj_mats1, params, k=K)
    assert out.shape == (N - K, OUT), out.shape
    assert jnp.allclose(out, ref, rtol=2e-2, atol=2e-2), (
        float(jnp.max(jnp.abs(out - ref))))

    # --- training-mode forward (in-kernel hash-PRNG dropout) ------------------
    out_train = image_gcn_forward(fea_nodes, adj_mats2, adj_mats1, params,
                                  k=K, deterministic=False, dropout_seed=123)
    out_train = jax.block_until_ready(out_train)
    assert bool(jnp.all(jnp.isfinite(out_train)))

    # --- MatWithNALoss: multi-block, both parallel sub-grids, ragged tail -----
    n_elem = 150000
    kx, kt, km = jax.random.split(k_loss, 3)
    logits = jax.random.normal(kx, (n_elem,), jnp.float32)
    target = (jax.random.uniform(kt, (n_elem,)) > 0.7).astype(jnp.float32)
    na_mask = jax.random.uniform(km, (n_elem,)) > 0.3

    loss = jax.block_until_ready(mat_with_na_loss(logits, target, na_mask))
    loss_ref = _reference_loss(logits, target, na_mask)
    assert jnp.allclose(loss, loss_ref, rtol=5e-4, atol=1e-5), (
        float(loss), float(loss_ref))

    # explicit-losstype paths (softplus compiled out for MSE/L1)
    jax.block_until_ready(mat_with_na_loss(logits, target, na_mask,
                                           losstype="MSE"))
    jax.block_until_ready(mat_with_na_loss(logits, target, na_mask,
                                           losstype="L1"))
    jax.block_until_ready(mat_with_na_loss(
        out, (out > 0).astype(jnp.float32), 1, losstype="BCE", pos_weight=2.0))

    print("KERNEL_OK")
</pallas_src>

<mosaic_0001>
module attributes {stable_mosaic.version = 11 : i64} {
  func.func @_matmul_kernel(%arg0: i32, %arg1: memref<16x256xf32, #tpu.memory_space<vmem>>, %arg2: memref<256x1024xf32, #tpu.memory_space<vmem>>, %arg3: memref<16x1024xf32, #tpu.memory_space<vmem>>, %arg4: memref<16x1024xf32, #tpu.memory_space<vmem>>) attributes {dimension_semantics = [#tpu.dimension_semantics<arbitrary>], iteration_bounds = array<i64: 4>, scalar_prefetch = 0 : i64, scratch_operands = 1 : i64, tpu.core_type = #tpu.core_type<tc>, window_params = [{transform_indices = @transform_0, window_bounds = array<i64: 16, 256>}, {transform_indices = @transform_1, window_bounds = array<i64: 256, 1024>}, {pipeline_mode = #tpu.pipeline_mode<synchronous>, transform_indices = @transform_2, window_bounds = array<i64: 16, 1024>}]} {
    %c0_i32 = arith.constant 0 : i32
    %0 = arith.cmpi eq, %arg0, %c0_i32 : i32
    %1 = arith.extui %0 : i1 to i32
    %c0_i32_0 = arith.constant 0 : i32
    %2 = arith.cmpi ne, %1, %c0_i32_0 : i32
    scf.if %2 {
      %cst_9 = arith.constant 0.000000e+00 : f32
      %12 = vector.broadcast %cst_9 : f32 to vector<16x1024xf32>
      %c0_10 = arith.constant 0 : index
      %c0_11 = arith.constant 0 : index
      %13 = vector.load %arg4[%c0_10, %c0_11] : memref<16x1024xf32, #tpu.memory_space<vmem>>, vector<16x1024xf32>
      tpu.vector_store %arg4[%c0_10, %c0_11], %12 {strides = array<i32>} : memref<16x1024xf32, #tpu.memory_space<vmem>>, vector<16x1024xf32>,
    } else {
    }
    %c0 = arith.constant 0 : index
    %c0_1 = arith.constant 0 : index
    %3 = vector.load %arg4[%c0, %c0_1] : memref<16x1024xf32, #tpu.memory_space<vmem>>, vector<16x1024xf32>
    %c0_2 = arith.constant 0 : index
    %c0_3 = arith.constant 0 : index
    %4 = vector.load %arg1[%c0_2, %c0_3] : memref<16x256xf32, #tpu.memory_space<vmem>>, vector<16x256xf32>
    %c0_4 = arith.constant 0 : index
    %c0_5 = arith.constant 0 : index
    %5 = vector.load %arg2[%c0_4, %c0_5] : memref<256x1024xf32, #tpu.memory_space<vmem>>, vector<256x1024xf32>
    %cst = arith.constant dense<0.000000e+00> : vector<16x1024xf32>
    %6 = tpu.matmul %4, %5, %cst {dimension_numbers = #tpu.dot_dimension_numbers<[1], [0], [0], [1], [0, 0, 1, 1], [], []>} : vector<16x256xf32>, vector<256x1024xf32>, vector<16x1024xf32> -> vector<16x1024xf32>
    %7 = arith.addf %3, %6 : vector<16x1024xf32>
    %c0_6 = arith.constant 0 : index
    %c0_7 = arith.constant 0 : index
    %8 = vector.load %arg4[%c0_6, %c0_7] : memref<16x1024xf32, #tpu.memory_space<vmem>>, vector<16x1024xf32>
    tpu.vector_store %arg4[%c0_6, %c0_7], %7 {strides = array<i32>} : memref<16x1024xf32, #tpu.memory_space<vmem>>, vector<16x1024xf32>,
    %c3_i32 = arith.constant 3 : i32
    %9 = arith.cmpi eq, %arg0, %c3_i32 : i32
    %10 = arith.extui %9 : i1 to i32
    %c0_i32_8 = arith.constant 0 : i32
    %11 = arith.cmpi ne, %10, %c0_i32_8 : i32
    scf.if %11 {
      %c0_9 = arith.constant 0 : index
      %c0_10 = arith.constant 0 : index
      %12 = vector.load %arg4[%c0_9, %c0_10] : memref<16x1024xf32, #tpu.memory_space<vmem>>, vector<16x1024xf32>
      %cst_11 = arith.constant 1.000000e+00 : f32
      %13 = vector.broadcast %cst_11 : f32 to vector<16x1024xf32>
      %14 = arith.mulf %12, %13 : vector<16x1024xf32>
      %c0_12 = arith.constant 0 : index
      %c0_13 = arith.constant 0 : index
      %15 = vector.load %arg3[%c0_12, %c0_13] : memref<16x1024xf32, #tpu.memory_space<vmem>>, vector<16x1024xf32>
      tpu.vector_store %arg3[%c0_12, %c0_13], %14 {strides = array<i32>} : memref<16x1024xf32, #tpu.memory_space<vmem>>, vector<16x1024xf32>,
    } else {
    }
    return
  }
  func.func @transform_0(%arg0: i32) -> (i32, i32) {
    %c0_i32 = arith.constant 0 : i32
    %c0_i32_0 = arith.constant 0 : i32
    return %c0_i32, %arg0 : i32, i32
  }
  func.func @transform_1(%arg0: i32) -> (i32, i32) {
    %c0_i32 = arith.constant 0 : i32
    %c0_i32_0 = arith.constant 0 : i32
    return %arg0, %c0_i32 : i32, i32
  }
  func.func @transform_2(%arg0: i32) -> (i32, i32) {
    %c0_i32 = arith.constant 0 : i32
    %c0_i32_0 = arith.constant 0 : i32
    %c0_i32_1 = arith.constant 0 : i32
    return %c0_i32, %c0_i32_0 : i32, i32
  }
}

</mosaic_0001>

<llo_original>
// kernel: pallas_matmul.1
$region0: #{pallas_matmul.1}
  #allocation0 [shape = 'u32[]', space=smem, size = 0x4, offset = 0x4, fixed_abs, tag = 'smem constant byte address 0x4 - core index']
  #allocation1 [shape = 'u32[72,128]{1,0:T(1,128)}', space=vmem, size = 0x9000, scoped, tag = 'internal scratch']
  #allocation2 [shape = 'f32[16,1024]{1,0:T(8,128)}', space=vmem, size = 0x10000, scoped, tag = 'scratch operand']
  %s0 = inlined_call_operand.hbm [shape: f32[16,1024], index: 0, kind: input, shape index: {}]
  %s1 = inlined_call_operand.hbm [shape: f32[1024,1024], index: 1, kind: input, shape index: {}]
  %s2 = inlined_call_operand.hbm [shape: f32[16,1024], index: 2, kind: output, shape index: {}]
  %s3 = sld [smem:[#allocation0]]
  $region57: #{pallas_matmul.1} parent=0
    _
  %s5 = ssub.s32 1, %s3
  %s6 = scalar_select 0, %s5, %s3
  $region1: #{pallas_matmul.1} parent=0
    #allocation3 [shape = 'u8[32768]{0}', space=vmem, size = 0x8000, scoped, tag = 'input window, operand 0']
    #allocation4 [shape = 's32[2]{0}', space=sflag, size = 0x8, scoped, tag = 'scoped memory for pallas_matmul.1']
    #allocation5 [shape = 's32[2]{0}', space=sflag, size = 0x8, scoped, tag = 'scoped memory for pallas_matmul.1']
    #allocation6 [shape = 'u8[2097152]{0}', space=vmem, size = 0x200000, scoped, tag = 'input window, operand 1']
    #allocation7 [shape = 's32[2]{0}', space=sflag, size = 0x8, scoped, tag = 'scoped memory for pallas_matmul.1']
    #allocation8 [shape = 'u8[65536]{0}', space=vmem, size = 0x10000, scoped, tag = 'output window, operand 0, single buffered']
    %7 = vsyncpa [#allocation4], 0
    %s8 = scalar_lea.sflag [#allocation4], 1
    %9 = vsyncpa %s8, 0
    %10 = vsyncpa [#allocation7], 0
    %s11 = scalar_lea.sflag [#allocation7], 1
    %12 = vsyncpa %s11, 0
    %13 = vsyncpa [#allocation5], 0
    loop: start=0, step=1, limit=6
    $region2: #{pallas_matmul.1} parent=1 // loop_pre_header
      _
    $region3: #{pallas_matmul.1} parent=1 // loop_header
      %s15 = sphi 0, %s19
      %p16 = scmp.ge.s32.totalorder %s15, 6
      %s25 = sphi 0, %s27
      %s28 = sphi 0, %s25
      %s29 = sphi 0, %s28
      %s45 = sphi 0, %s29
      %s51 = sphi 0, %s53
      %s54 = sphi 0, %s51
      %s55 = sphi 0, %s54
      %s71 = sphi 0, %s55
      %s75 = sphi 0, %s75
      %s77 = sphi 0, %s75
      %s78 = sphi 0, %s77
      %s92 = sphi 0, %s78
    $region4: #{pallas_matmul.1} parent=1 // loop_header_branch
      %18 = sbr.rel (%p16) target = $region8
    $region5: #{pallas_matmul.1} parent=1 // loop_body
      %s20 = ssub.s32 %s15, 1
      %s21 = ssub.s32 %s15, 2
      %s22 = sadd.s32 %s15, 1
      %s23 = ssub.s32 %s15, %s22
      %p24 = scmp.eq.s32.totalorder %s23, 0
      %s26 = sadd.s32 %s25, 1
      %s27 = scalar_select %p24, %s25, %s26
      %p30 = pneg %p24
      %p31 = scmp.eq.s32.totalorder %s15, 3
      %p32 = por %p30, %p31
      %p33 = scmp.ne.s32.totalorder %s25, %s28
      %p34 = scmp.eq.s32.totalorder %s15, 0
      %p35 = por %p33, %p34
      %p36 = scmp.ne.s32.totalorder %s25, %s28
      %p37 = scmp.eq.s32.totalorder %s20, 3
      %p38 = por %p36, %p37
      %p39 = scmp.ne.s32.totalorder %s28, %s29
      %p40 = scmp.eq.s32.totalorder %s20, 0
      %p41 = por %p39, %p40
      %p42 = scmp.ne.s32.totalorder %s28, %s29
      %p43 = scmp.eq.s32.totalorder %s21, 3
      %p44 = por %p42, %p43
      %p46 = scmp.ne.s32.totalorder %s29, %s45
      %p47 = scmp.eq.s32.totalorder %s21, 0
      %p48 = por %p46, %p47
      %s49 = ssub.s32 %s15, %s22
      %p50 = scmp.eq.s32.totalorder %s49, 0
      %s52 = sadd.s32 %s51, 1
      %s53 = scalar_select %p50, %s51, %s52
      %p56 = pneg %p50
      %p57 = scmp.eq.s32.totalorder %s15, 3
      %p58 = por %p56, %p57
      %p59 = scmp.ne.s32.totalorder %s51, %s54
      %p60 = scmp.eq.s32.totalorder %s15, 0
      %p61 = por %p59, %p60
      %p62 = scmp.ne.s32.totalorder %s51, %s54
      %p63 = scmp.eq.s32.totalorder %s20, 3
      %p64 = por %p62, %p63
      %p65 = scmp.ne.s32.totalorder %s54, %s55
      %p66 = scmp.eq.s32.totalorder %s20, 0
      %p67 = por %p65, %p66
      %p68 = scmp.ne.s32.totalorder %s54, %s55
      %p69 = scmp.eq.s32.totalorder %s21, 3
      %p70 = por %p68, %p69
      %p72 = scmp.ne.s32.totalorder %s55, %s71
      %p73 = scmp.eq.s32.totalorder %s21, 0
      %p74 = por %p72, %p73
      %s76 = sadd.s32 %s75, 1
      %p79 = scmp.eq.s32.totalorder %s15, 3
      %p80 = scmp.ne.s32.totalorder %s75, %s77
      %p81 = scmp.eq.s32.totalorder %s15, 0
      %p82 = por %p80, %p81
      %p83 = scmp.ne.s32.totalorder %s75, %s77
      %p84 = scmp.eq.s32.totalorder %s20, 3
      %p85 = por %p83, %p84
      %p86 = scmp.ne.s32.totalorder %s77, %s78
      %p87 = scmp.eq.s32.totalorder %s20, 0
      %p88 = por %p86, %p87
      %p89 = scmp.ne.s32.totalorder %s77, %s78
      %p90 = scmp.eq.s32.totalorder %s21, 3
      %p91 = por %p89, %p90
      %p93 = scmp.ne.s32.totalorder %s78, %s92
      %p94 = scmp.eq.s32.totalorder %s21, 0
      %p95 = por %p93, %p94
      %p96 = scmp.le.s32.totalorder 1, %s15
      %p97 = scmp.lt.s32.totalorder %s15, 5
      %p98 = pnand %p96, %p97
      %p99 = pneg %p98
      // Predicated region
      $region9: #{pallas_matmul.1} parent=5 // pred_check
        _
      $region10: #{pallas_matmul.1} parent=5 // pred_check_branch
        %101 = sbr.rel (%p98) target = $region12
      $region11: #{pallas_matmul.1} parent=5 // pred_region
        %s102 = ssub.s32 %s15, 1
      $region12: #{pallas_matmul.1} parent=5 // pred_fallthru
        _
      %p103 = scmp.lt.s32.totalorder %s15, 4
      // Predicated region
      $region13: #{pallas_matmul.1} parent=5 // pred_check
        %p104 = pneg %p103
      $region14: #{pallas_matmul.1} parent=5 // pred_check_branch
        %106 = sbr.rel (%p104) target = $region16
      $region15: #{pallas_matmul.1} parent=5 // pred_region
        // Predicated region
        $region17: #{pallas_matmul.1} parent=15 // pred_check
          %p107 = pneg %p35
        $region18: #{pallas_matmul.1} parent=15 // pred_check_branch
          %109 = sbr.rel (%p107) target = $region20
        $region19: #{pallas_matmul.1} parent=15 // pred_region
          %s110 = sand.u32 %s25, 1
          %s111 = scalar_lea.sflag [#allocation4], %s110
          %s112 = sand.u32 %s25, 1
          %s113 = smul.addr %s112, 32
          %s114 = scalar_lea.vmem [#allocation3], %s113
          %s115 = smul.u32 2, %s15
          %117 = vsyncadd %s111, 0
          %s118 = smul.addr %s115, 8
          %s119 = scalar_lea.hbm %s0, %s118
          %s120 = sshll.u32 %s119, 4
          %s121 = int_to_ptr.hbm [resolvable:$true] %s120
          %s122 = sshll.u32 %s114, 4
          %s123 = int_to_ptr.vmem [resolvable:$true] %s122
          %128 = dma.hbm_to_vmem [thread:$0]  %s121, 512, %s123, %s111, 1024, 256, 16
        $region20: #{pallas_matmul.1} parent=15 // pred_fallthru
          _
        // Predicated region
        $region21: #{pallas_matmul.1} parent=15 // pred_check
          %p129 = pneg %p61
        $region22: #{pallas_matmul.1} parent=15 // pred_check_branch
          %131 = sbr.rel (%p129) target = $region24
        $region23: #{pallas_matmul.1} parent=15 // pred_region
          %s132 = sand.u32 %s51, 1
          %s133 = scalar_lea.sflag [#allocation7], %s132
          %s134 = sand.u32 %s51, 1
          %s135 = smul.addr %s134, 2048
          %s136 = scalar_lea.vmem [#allocation6], %s135
          %s137 = smul.u32 32, %s15
          %139 = vsyncadd %s133, 0
          %s140 = smul.addr %s137, 8
          %s141 = smul.addr %s140, 8
          %s142 = scalar_lea.hbm %s1, %s141
          %s143 = sshll.u32 %s142, 4
          %s144 = int_to_ptr.hbm [resolvable:$true] %s143
          %s145 = sshll.u32 %s136, 4
          %s146 = int_to_ptr.vmem [resolvable:$true] %s145
          %151 = dma.hbm_to_vmem [thread:$0]  %s144, 32768, %s146, %s133, 1024, 1024, 64
        $region24: #{pallas_matmul.1} parent=15 // pred_fallthru
          _
      $region16: #{pallas_matmul.1} parent=5 // pred_fallthru
        _
      %p152 = scmp.le.s32.totalorder 1, %s15
      %p153 = scmp.lt.s32.totalorder %s15, 5
      %p154 = pnand %p152, %p153
      %p155 = pneg %p154
      // Predicated region
      $region25: #{pallas_matmul.1} parent=5 // pred_check
        _
      $region26: #{pallas_matmul.1} parent=5 // pred_check_branch
        %157 = sbr.rel (%p154) target = $region28
      $region27: #{pallas_matmul.1} parent=5 // pred_region
        %s158 = ssub.s32 %s15, 1
        %s159 = sand.u32 %s28, 1
        %s160 = scalar_lea.sflag [#allocation4], %s159
        %s161 = sand.u32 %s28, 1
        %s162 = smul.addr %s161, 32
        %s163 = scalar_lea.vmem [#allocation3], %s162
        // Predicated region
        $region29: #{pallas_matmul.1} parent=27 // pred_check
          %p164 = pneg %p41
        $region30: #{pallas_matmul.1} parent=27 // pred_check_branch
          %166 = sbr.rel (%p164) target = $region32
        $region31: #{pallas_matmul.1} parent=27 // pred_region
          %168 = dma.done %s160, 512
        $region32: #{pallas_matmul.1} parent=27 // pred_fallthru
          _
        %s169 = sand.u32 %s54, 1
        %s170 = scalar_lea.sflag [#allocation7], %s169
        %s171 = sand.u32 %s54, 1
        %s172 = smul.addr %s171, 2048
        %s173 = scalar_lea.vmem [#allocation6], %s172
        // Predicated region
        $region33: #{pallas_matmul.1} parent=27 // pred_check
          %p174 = pneg %p67
        $region34: #{pallas_matmul.1} parent=27 // pred_check_branch
          %176 = sbr.rel (%p174) target = $region36
        $region35: #{pallas_matmul.1} parent=27 // pred_region
          %178 = dma.done %s170, 32768
        $region36: #{pallas_matmul.1} parent=27 // pred_fallthru
          _
        %s179 = sand.u32 %s28, 1
        %s180 = scalar_lea.sflag [#allocation4], %s179
        %s181 = sand.u32 %s28, 1
        %s182 = smul.addr %s181, 32
        %s183 = scalar_lea.vmem [#allocation3], %s182
        %p184 = pneg %p41
        %p185 = pneg %p38
        %s186 = sand.u32 %s54, 1
        %s187 = scalar_lea.sflag [#allocation7], %s186
        %s188 = sand.u32 %s54, 1
        %s189 = smul.addr %s188, 2048
        %s190 = scalar_lea.vmem [#allocation6], %s189
        %p191 = pneg %p67
        %p192 = pneg %p64
        %p193 = pneg %p88
        %p194 = pneg %p85
        %s195 = smul.u32 2, %s20
        %s196 = smul.u32 32, %s20
        %p197 = scmp.eq.s32.totalorder %s20, 0
        // Predicated region
        $region37: #{pallas_matmul.1} parent=27 // pred_check
          %p198 = pneg %p197
        $region38: #{pallas_matmul.1} parent=27 // pred_check_branch
          %200 = sbr.rel (%p198) target = $region40
        $region39: #{pallas_matmul.1} parent=27 // pred_region
          %201 = vst [vmem:[#allocation2] sm:$0xff] 0.0
          %202 = vst [vmem:[#allocation2 + $0x8] sm:$0xff] 0.0
          %203 = vst [vmem:[#allocation2 + $0x10] sm:$0xff] 0.0
          %204 = vst [vmem:[#allocation2 + $0x18] sm:$0xff] 0.0
          %205 = vst [vmem:[#allocation2 + $0x20] sm:$0xff] 0.0
          %206 = vst [vmem:[#allocation2 + $0x28] sm:$0xff] 0.0
          %207 = vst [vmem:[#allocation2 + $0x30] sm:$0xff] 0.0
          %208 = vst [vmem:[#allocation2 + $0x38] sm:$0xff] 0.0
          %209 = vst [vmem:[#allocation2 + $0x40] sm:$0xff] 0.0
          %210 = vst [vmem:[#allocation2 + $0x48] sm:$0xff] 0.0
          %211 = vst [vmem:[#allocation2 + $0x50] sm:$0xff] 0.0
          %212 = vst [vmem:[#allocation2 + $0x58] sm:$0xff] 0.0
          %213 = vst [vmem:[#allocation2 + $0x60] sm:$0xff] 0.0
          %214 = vst [vmem:[#allocation2 + $0x68] sm:$0xff] 0.0
          %215 = vst [vmem:[#allocation2 + $0x70] sm:$0xff] 0.0
          %216 = vst [vmem:[#allocation2 + $0x78] sm:$0xff] 0.0
        $region40: #{pallas_matmul.1} parent=27 // pred_fallthru
          _
        %v217 = vld [vmem:[#allocation2] sm:$0xff]
        %v218 = vld [vmem:[#allocation2 + $0x8] sm:$0xff]
        %v219 = vld [vmem:[#allocation2 + $0x10] sm:$0xff]
        %v220 = vld [vmem:[#allocation2 + $0x18] sm:$0xff]
        %v221 = vld [vmem:[#allocation2 + $0x20] sm:$0xff]
        %v222 = vld [vmem:[#allocation2 + $0x28] sm:$0xff]
        %v223 = vld [vmem:[#allocation2 + $0x30] sm:$0xff]
        %v224 = vld [vmem:[#allocation2 + $0x38] sm:$0xff]
        %v225 = vld [vmem:[#allocation2 + $0x40] sm:$0xff]
        %v226 = vld [vmem:[#allocation2 + $0x48] sm:$0xff]
        %v227 = vld [vmem:[#allocation2 + $0x50] sm:$0xff]
        %v228 = vld [vmem:[#allocation2 + $0x58] sm:$0xff]
        %v229 = vld [vmem:[#allocation2 + $0x60] sm:$0xff]
        %v230 = vld [vmem:[#allocation2 + $0x68] sm:$0xff]
        %v231 = vld [vmem:[#allocation2 + $0x70] sm:$0xff]
        %v232 = vld [vmem:[#allocation2 + $0x78] sm:$0xff]
        %v233 = vld [vmem:[%s163] sm:$0xff]
        %v234 = vld [vmem:[%s163 + $0x8] sm:$0xff]
        %v235 = vld [vmem:[%s163 + $0x10] sm:$0xff]
        %v236 = vld [vmem:[%s163 + $0x18] sm:$0xff]
        %v237 = vld [vmem:[%s173] sm:$0xff]
        %v238 = vld [vmem:[%s173 + $0x8] sm:$0xff]
        %v239 = vld [vmem:[%s173 + $0x10] sm:$0xff]
        %v240 = vld [vmem:[%s173 + $0x18] sm:$0xff]
        %v241 = vld [vmem:[%s173 + $0x20] sm:$0xff]
        %v242 = vld [vmem:[%s173 + $0x28] sm:$0xff]
        %v243 = vld [vmem:[%s173 + $0x30] sm:$0xff]
        %v244 = vld [vmem:[%s173 + $0x38] sm:$0xff]
        %v245 = vld [vmem:[%s173 + $0x40] sm:$0xff]
        %v246 = vld [vmem:[%s173 + $0x48] sm:$0xff]
        %v247 = vld [vmem:[%s173 + $0x50] sm:$0xff]
        %v248 = vld [vmem:[%s173 + $0x58] sm:$0xff]
        %v249 = vld [vmem:[%s173 + $0x60] sm:$0xff]
        %v250 = vld [vmem:[%s173 + $0x68] sm:$0xff]
        %v251 = vld [vmem:[%s173 + $0x70] sm:$0xff]
        %v252 = vld [vmem:[%s173 + $0x78] sm:$0xff]
        %v253 = vld [vmem:[%s173 + $0x80] sm:$0xff]
        %v254 = vld [vmem:[%s173 + $0x88] sm:$0xff]
        %v255 = vld [vmem:[%s173 + $0x90] sm:$0xff]
        %v256 = vld [vmem:[%s173 + $0x98] sm:$0xff]
        %v257 = vld [vmem:[%s173 + $0xa0] sm:$0xff]
        %v258 = vld [vmem:[%s173 + $0xa8] sm:$0xff]
        %v259 = vld [vmem:[%s173 + $0xb0] sm:$0xff]
        %v260 = vld [vmem:[%s173 + $0xb8] sm:$0xff]
        %v261 = vld [vmem:[%s173 + $0xc0] sm:$0xff]
        %v262 = vld [vmem:[%s173 + $0xc8] sm:$0xff]
        %v263 = vld [vmem:[%s173 + $0xd0] sm:$0xff]
        %v264 = vld [vmem:[%s173 + $0xd8] sm:$0xff]
        %v265 = vld [vmem:[%s173 + $0xe0] sm:$0xff]
        %v266 = vld [vmem:[%s173 + $0xe8] sm:$0xff]
        %v267 = vld [vmem:[%s173 + $0xf0] sm:$0xff]
        %v268 = vld [vmem:[%s173 + $0xf8] sm:$0xff]
        %v269 = vld [vmem:[%s173 + $0x100] sm:$0xff]
        %v270 = vld [vmem:[%s173 + $0x108] sm:$0xff]
        %v271 = vld [vmem:[%s173 + $0x110] sm:$0xff]
        %v272 = vld [vmem:[%s173 + $0x118] sm:$0xff]
        %v273 = vld [vmem:[%s173 + $0x120] sm:$0xff]
        %v274 = vld [vmem:[%s173 + $0x128] sm:$0xff]
        %v275 = vld [vmem:[%s173 + $0x130] sm:$0xff]
        %v276 = vld [vmem:[%s173 + $0x138] sm:$0xff]
        %v277 = vld [vmem:[%s173 + $0x140] sm:$0xff]
        %v278 = vld [vmem:[%s173 + $0x148] sm:$0xff]
        %v279 = vld [vmem:[%s173 + $0x150] sm:$0xff]
        %v280 = vld [vmem:[%s173 + $0x158] sm:$0xff]
        %v281 = vld [vmem:[%s173 + $0x160] sm:$0xff]
        %v282 = vld [vmem:[%s173 + $0x168] sm:$0xff]
        %v283 = vld [vmem:[%s173 + $0x170] sm:$0xff]
        %v284 = vld [vmem:[%s173 + $0x178] sm:$0xff]
        %v285 = vld [vmem:[%s173 + $0x180] sm:$0xff]
        %v286 = vld [vmem:[%s173 + $0x188] sm:$0xff]
        %v287 = vld [vmem:[%s173 + $0x190] sm:$0xff]
        %v288 = vld [vmem:[%s173 + $0x198] sm:$0xff]
        %v289 = vld [vmem:[%s173 + $0x1a0] sm:$0xff]
        %v290 = vld [vmem:[%s173 + $0x1a8] sm:$0xff]
        %v291 = vld [vmem:[%s173 + $0x1b0] sm:$0xff]
        %v292 = vld [vmem:[%s173 + $0x1b8] sm:$0xff]
        %v293 = vld [vmem:[%s173 + $0x1c0] sm:$0xff]
        %v294 = vld [vmem:[%s173 + $0x1c8] sm:$0xff]
        %v295 = vld [vmem:[%s173 + $0x1d0] sm:$0xff]
        %v296 = vld [vmem:[%s173 + $0x1d8] sm:$0xff]
        %v297 = vld [vmem:[%s173 + $0x1e0] sm:$0xff]
        %v298 = vld [vmem:[%s173 + $0x1e8] sm:$0xff]
        %v299 = vld [vmem:[%s173 + $0x1f0] sm:$0xff]
        %v300 = vld [vmem:[%s173 + $0x1f8] sm:$0xff]
        %v301 = vld [vmem:[%s173 + $0x200] sm:$0xff]
        %v302 = vld [vmem:[%s173 + $0x208] sm:$0xff]
        %v303 = vld [vmem:[%s173 + $0x210] sm:$0xff]
        %v304 = vld [vmem:[%s173 + $0x218] sm:$0xff]
        %v305 = vld [vmem:[%s173 + $0x220] sm:$0xff]
        %v306 = vld [vmem:[%s173 + $0x228] sm:$0xff]
        %v307 = vld [vmem:[%s173 + $0x230] sm:$0xff]
        %v308 = vld [vmem:[%s173 + $0x238] sm:$0xff]
        %v309 = vld [vmem:[%s173 + $0x240] sm:$0xff]
        %v310 = vld [vmem:[%s173 + $0x248] sm:$0xff]
        %v311 = vld [vmem:[%s173 + $0x250] sm:$0xff]
        %v312 = vld [vmem:[%s173 + $0x258] sm:$0xff]
        %v313 = vld [vmem:[%s173 + $0x260] sm:$0xff]
        %v314 = vld [vmem:[%s173 + $0x268] sm:$0xff]
        %v315 = vld [vmem:[%s173 + $0x270] sm:$0xff]
        %v316 = vld [vmem:[%s173 + $0x278] sm:$0xff]
        %v317 = vld [vmem:[%s173 + $0x280] sm:$0xff]
        %v318 = vld [vmem:[%s173 + $0x288] sm:$0xff]
        %v319 = vld [vmem:[%s173 + $0x290] sm:$0xff]
        %v320 = vld [vmem:[%s173 + $0x298] sm:$0xff]
        %v321 = vld [vmem:[%s173 + $0x2a0] sm:$0xff]
        %v322 = vld [vmem:[%s173 + $0x2a8] sm:$0xff]
        %v323 = vld [vmem:[%s173 + $0x2b0] sm:$0xff]
        %v324 = vld [vmem:[%s173 + $0x2b8] sm:$0xff]
        %v325 = vld [vmem:[%s173 + $0x2c0] sm:$0xff]
        %v326 = vld [vmem:[%s173 + $0x2c8] sm:$0xff]
        %v327 = vld [vmem:[%s173 + $0x2d0] sm:$0xff]
        %v328 = vld [vmem:[%s173 + $0x2d8] sm:$0xff]
        %v329 = vld [vmem:[%s173 + $0x2e0] sm:$0xff]
        %v330 = vld [vmem:[%s173 + $0x2e8] sm:$0xff]
        %v331 = vld [vmem:[%s173 + $0x2f0] sm:$0xff]
        %v332 = vld [vmem:[%s173 + $0x2f8] sm:$0xff]
        %v333 = vld [vmem:[%s173 + $0x300] sm:$0xff]
        %v334 = vld [vmem:[%s173 + $0x308] sm:$0xff]
        %v335 = vld [vmem:[%s173 + $0x310] sm:$0xff]
        %v336 = vld [vmem:[%s173 + $0x318] sm:$0xff]
        %v337 = vld [vmem:[%s173 + $0x320] sm:$0xff]
        %v338 = vld [vmem:[%s173 + $0x328] sm:$0xff]
        %v339 = vld [vmem:[%s173 + $0x330] sm:$0xff]
        %v340 = vld [vmem:[%s173 + $0x338] sm:$0xff]
        %v341 = vld [vmem:[%s173 + $0x340] sm:$0xff]
        %v342 = vld [vmem:[%s173 + $0x348] sm:$0xff]
        %v343 = vld [vmem:[%s173 + $0x350] sm:$0xff]
        %v344 = vld [vmem:[%s173 + $0x358] sm:$0xff]
        %v345 = vld [vmem:[%s173 + $0x360] sm:$0xff]
        %v346 = vld [vmem:[%s173 + $0x368] sm:$0xff]
        %v347 = vld [vmem:[%s173 + $0x370] sm:$0xff]
        %v348 = vld [vmem:[%s173 + $0x378] sm:$0xff]
        %v349 = vld [vmem:[%s173 + $0x380] sm:$0xff]
        %v350 = vld [vmem:[%s173 + $0x388] sm:$0xff]
        %v351 = vld [vmem:[%s173 + $0x390] sm:$0xff]
        %v352 = vld [vmem:[%s173 + $0x398] sm:$0xff]
        %v353 = vld [vmem:[%s173 + $0x3a0] sm:$0xff]
        %v354 = vld [vmem:[%s173 + $0x3a8] sm:$0xff]
        %v355 = vld [vmem:[%s173 + $0x3b0] sm:$0xff]
        %v356 = vld [vmem:[%s173 + $0x3b8] sm:$0xff]
        %v357 = vld [vmem:[%s173 + $0x3c0] sm:$0xff]
        %v358 = vld [vmem:[%s173 + $0x3c8] sm:$0xff]
        %v359 = vld [vmem:[%s173 + $0x3d0] sm:$0xff]
        %v360 = vld [vmem:[%s173 + $0x3d8] sm:$0xff]
        %v361 = vld [vmem:[%s173 + $0x3e0] sm:$0xff]
        %v362 = vld [vmem:[%s173 + $0x3e8] sm:$0xff]
        %v363 = vld [vmem:[%s173 + $0x3f0] sm:$0xff]
        %v364 = vld [vmem:[%s173 + $0x3f8] sm:$0xff]
        %v365 = vld [vmem:[%s173 + $0x400] sm:$0xff]
        %v366 = vld [vmem:[%s173 + $0x408] sm:$0xff]
        %v367 = vld [vmem:[%s173 + $0x410] sm:$0xff]
        %v368 = vld [vmem:[%s173 + $0x418] sm:$0xff]
        %v369 = vld [vmem:[%s173 + $0x420] sm:$0xff]
        %v370 = vld [vmem:[%s173 + $0x428] sm:$0xff]
        %v371 = vld [vmem:[%s173 + $0x430] sm:$0xff]
        %v372 = vld [vmem:[%s173 + $0x438] sm:$0xff]
        %v373 = vld [vmem:[%s173 + $0x440] sm:$0xff]
        %v374 = vld [vmem:[%s173 + $0x448] sm:$0xff]
        %v375 = vld [vmem:[%s173 + $0x450] sm:$0xff]
        %v376 = vld [vmem:[%s173 + $0x458] sm:$0xff]
        %v377 = vld [vmem:[%s173 + $0x460] sm:$0xff]
        %v378 = vld [vmem:[%s173 + $0x468] sm:$0xff]
        %v379 = vld [vmem:[%s173 + $0x470] sm:$0xff]
        %v380 = vld [vmem:[%s173 + $0x478] sm:$0xff]
        %v381 = vld [vmem:[%s173 + $0x480] sm:$0xff]
        %v382 = vld [vmem:[%s173 + $0x488] sm:$0xff]
        %v383 = vld [vmem:[%s173 + $0x490] sm:$0xff]
        %v384 = vld [vmem:[%s173 + $0x498] sm:$0xff]
        %v385 = vld [vmem:[%s173 + $0x4a0] sm:$0xff]
        %v386 = vld [vmem:[%s173 + $0x4a8] sm:$0xff]
        %v387 = vld [vmem:[%s173 + $0x4b0] sm:$0xff]
        %v388 = vld [vmem:[%s173 + $0x4b8] sm:$0xff]
        %v389 = vld [vmem:[%s173 + $0x4c0] sm:$0xff]
        %v390 = vld [vmem:[%s173 + $0x4c8] sm:$0xff]
        %v391 = vld [vmem:[%s173 + $0x4d0] sm:$0xff]
        %v392 = vld [vmem:[%s173 + $0x4d8] sm:$0xff]
        %v393 = vld [vmem:[%s173 + $0x4e0] sm:$0xff]
        %v394 = vld [vmem:[%s173 + $0x4e8] sm:$0xff]
        %v395 = vld [vmem:[%s173 + $0x4f0] sm:$0xff]
        %v396 = vld [vmem:[%s173 + $0x4f8] sm:$0xff]
        %v397 = vld [vmem:[%s173 + $0x500] sm:$0xff]
        %v398 = vld [vmem:[%s173 + $0x508] sm:$0xff]
        %v399 = vld [vmem:[%s173 + $0x510] sm:$0xff]
        %v400 = vld [vmem:[%s173 + $0x518] sm:$0xff]
        %v401 = vld [vmem:[%s173 + $0x520] sm:$0xff]
        %v402 = vld [vmem:[%s173 + $0x528] sm:$0xff]
        %v403 = vld [vmem:[%s173 + $0x530] sm:$0xff]
        %v404 = vld [vmem:[%s173 + $0x538] sm:$0xff]
        %v405 = vld [vmem:[%s173 + $0x540] sm:$0xff]
        %v406 = vld [vmem:[%s173 + $0x548] sm:$0xff]
        %v407 = vld [vmem:[%s173 + $0x550] sm:$0xff]
        %v408 = vld [vmem:[%s173 + $0x558] sm:$0xff]
        %v409 = vld [vmem:[%s173 + $0x560] sm:$0xff]
        %v410 = vld [vmem:[%s173 + $0x568] sm:$0xff]
        %v411 = vld [vmem:[%s173 + $0x570] sm:$0xff]
        %v412 = vld [vmem:[%s173 + $0x578] sm:$0xff]
        %v413 = vld [vmem:[%s173 + $0x580] sm:$0xff]
        %v414 = vld [vmem:[%s173 + $0x588] sm:$0xff]
        %v415 = vld [vmem:[%s173 + $0x590] sm:$0xff]
        %v416 = vld [vmem:[%s173 + $0x598] sm:$0xff]
        %v417 = vld [vmem:[%s173 + $0x5a0] sm:$0xff]
        %v418 = vld [vmem:[%s173 + $0x5a8] sm:$0xff]
        %v419 = vld [vmem:[%s173 + $0x5b0] sm:$0xff]
        %v420 = vld [vmem:[%s173 + $0x5b8] sm:$0xff]
        %v421 = vld [vmem:[%s173 + $0x5c0] sm:$0xff]
        %v422 = vld [vmem:[%s173 + $0x5c8] sm:$0xff]
        %v423 = vld [vmem:[%s173 + $0x5d0] sm:$0xff]
        %v424 = vld [vmem:[%s173 + $0x5d8] sm:$0xff]
        %v425 = vld [vmem:[%s173 + $0x5e0] sm:$0xff]
        %v426 = vld [vmem:[%s173 + $0x5e8] sm:$0xff]
        %v427 = vld [vmem:[%s173 + $0x5f0] sm:$0xff]
        %v428 = vld [vmem:[%s173 + $0x5f8] sm:$0xff]
        %v429 = vld [vmem:[%s173 + $0x600] sm:$0xff]
        %v430 = vld [vmem:[%s173 + $0x608] sm:$0xff]
        %v431 = vld [vmem:[%s173 + $0x610] sm:$0xff]
        %v432 = vld [vmem:[%s173 + $0x618] sm:$0xff]
        %v433 = vld [vmem:[%s173 + $0x620] sm:$0xff]
        %v434 = vld [vmem:[%s173 + $0x628] sm:$0xff]
        %v435 = vld [vmem:[%s173 + $0x630] sm:$0xff]
        %v436 = vld [vmem:[%s173 + $0x638] sm:$0xff]
        %v437 = vld [vmem:[%s173 + $0x640] sm:$0xff]
        %v438 = vld [vmem:[%s173 + $0x648] sm:$0xff]
        %v439 = vld [vmem:[%s173 + $0x650] sm:$0xff]
        %v440 = vld [vmem:[%s173 + $0x658] sm:$0xff]
        %v441 = vld [vmem:[%s173 + $0x660] sm:$0xff]
        %v442 = vld [vmem:[%s173 + $0x668] sm:$0xff]
        %v443 = vld [vmem:[%s173 + $0x670] sm:$0xff]
        %v444 = vld [vmem:[%s173 + $0x678] sm:$0xff]
        %v445 = vld [vmem:[%s173 + $0x680] sm:$0xff]
        %v446 = vld [vmem:[%s173 + $0x688] sm:$0xff]
        %v447 = vld [vmem:[%s173 + $0x690] sm:$0xff]
        %v448 = vld [vmem:[%s173 + $0x698] sm:$0xff]
        %v449 = vld [vmem:[%s173 + $0x6a0] sm:$0xff]
        %v450 = vld [vmem:[%s173 + $0x6a8] sm:$0xff]
        %v451 = vld [vmem:[%s173 + $0x6b0] sm:$0xff]
        %v452 = vld [vmem:[%s173 + $0x6b8] sm:$0xff]
        %v453 = vld [vmem:[%s173 + $0x6c0] sm:$0xff]
        %v454 = vld [vmem:[%s173 + $0x6c8] sm:$0xff]
        %v455 = vld [vmem:[%s173 + $0x6d0] sm:$0xff]
        %v456 = vld [vmem:[%s173 + $0x6d8] sm:$0xff]
        %v457 = vld [vmem:[%s173 + $0x6e0] sm:$0xff]
        %v458 = vld [vmem:[%s173 + $0x6e8] sm:$0xff]
        %v459 = vld [vmem:[%s173 + $0x6f0] sm:$0xff]
        %v460 = vld [vmem:[%s173 + $0x6f8] sm:$0xff]
        %v461 = vld [vmem:[%s173 + $0x700] sm:$0xff]
        %v462 = vld [vmem:[%s173 + $0x708] sm:$0xff]
        %v463 = vld [vmem:[%s173 + $0x710] sm:$0xff]
        %v464 = vld [vmem:[%s173 + $0x718] sm:$0xff]
        %v465 = vld [vmem:[%s173 + $0x720] sm:$0xff]
        %v466 = vld [vmem:[%s173 + $0x728] sm:$0xff]
        %v467 = vld [vmem:[%s173 + $0x730] sm:$0xff]
        %v468 = vld [vmem:[%s173 + $0x738] sm:$0xff]
        %v469 = vld [vmem:[%s173 + $0x740] sm:$0xff]
        %v470 = vld [vmem:[%s173 + $0x748] sm:$0xff]
        %v471 = vld [vmem:[%s173 + $0x750] sm:$0xff]
        %v472 = vld [vmem:[%s173 + $0x758] sm:$0xff]
        %v473 = vld [vmem:[%s173 + $0x760] sm:$0xff]
        %v474 = vld [vmem:[%s173 + $0x768] sm:$0xff]
        %v475 = vld [vmem:[%s173 + $0x770] sm:$0xff]
        %v476 = vld [vmem:[%s173 + $0x778] sm:$0xff]
        %v477 = vld [vmem:[%s173 + $0x780] sm:$0xff]
        %v478 = vld [vmem:[%s173 + $0x788] sm:$0xff]
        %v479 = vld [vmem:[%s173 + $0x790] sm:$0xff]
        %v480 = vld [vmem:[%s173 + $0x798] sm:$0xff]
        %v481 = vld [vmem:[%s173 + $0x7a0] sm:$0xff]
        %v482 = vld [vmem:[%s173 + $0x7a8] sm:$0xff]
        %v483 = vld [vmem:[%s173 + $0x7b0] sm:$0xff]
        %v484 = vld [vmem:[%s173 + $0x7b8] sm:$0xff]
        %v485 = vld [vmem:[%s173 + $0x7c0] sm:$0xff]
        %v486 = vld [vmem:[%s173 + $0x7c8] sm:$0xff]
        %v487 = vld [vmem:[%s173 + $0x7d0] sm:$0xff]
        %v488 = vld [vmem:[%s173 + $0x7d8] sm:$0xff]
        %v489 = vld [vmem:[%s173 + $0x7e0] sm:$0xff]
        %v490 = vld [vmem:[%s173 + $0x7e8] sm:$0xff]
        %v491 = vld [vmem:[%s173 + $0x7f0] sm:$0xff]
        %v492 = vld [vmem:[%s173 + $0x7f8] sm:$0xff]
        %493 = vmatpush.msra.mxu0 %v357
        %494 = vmatpush.msra.mxu0 %v349
        %495 = vmatpush.msra.mxu0 %v341
        %496 = vmatpush.msra.mxu0 %v333
        %497 = vmatpush.msra.mxu0 %v325
        %498 = vmatpush.msra.mxu0 %v317
        %499 = vmatpush.msra.mxu0 %v309
        %500 = vmatpush.msra.mxu0 %v301
        %501 = vmatpush.msra.mxu0 %v293
        %502 = vmatpush.msra.mxu0 %v285
        %503 = vmatpush.msra.mxu0 %v277
        %504 = vmatpush.msra.mxu0 %v269
        %505 = vmatpush.msra.mxu0 %v261
        %506 = vmatpush.msra.mxu0 %v253
        %507 = vmatpush.msra.mxu0 %v245
        %508 = vmatpush.msra.mxu0 %v237
        %509 = vmatmul.f32.gmra.mxu0 %v233
        %v510 = vpop.f32.mrf.mxu0
        %v511 = vadd.f32 0.0, %v510
        %512 = vmatmul.f32.gmra.mxu0 %v235
        %v513 = vpop.f32.mrf.mxu0
        %v514 = vadd.f32 0.0, %v513
        %515 = vdwg.mxu0
        %516 = vmatpush.msra.mxu0 %v485
        %517 = vmatpush.msra.mxu0 %v477
        %518 = vmatpush.msra.mxu0 %v469
        %519 = vmatpush.msra.mxu0 %v461
        %520 = vmatpush.msra.mxu0 %v453
        %521 = vmatpush.msra.mxu0 %v445
        %522 = vmatpush.msra.mxu0 %v437
        %523 = vmatpush.msra.mxu0 %v429
        %524 = vmatpush.msra.mxu0 %v421
        %525 = vmatpush.msra.mxu0 %v413
        %526 = vmatpush.msra.mxu0 %v405
        %527 = vmatpush.msra.mxu0 %v397
        %528 = vmatpush.msra.mxu0 %v389
        %529 = vmatpush.msra.mxu0 %v381
        %530 = vmatpush.msra.mxu0 %v373
        %531 = vmatpush.msra.mxu0 %v365
        %532 = vmatmul.f32.gmra.mxu0 %v234
        %v533 = vpop.f32.mrf.mxu0
        %v534 = vadd.f32 %v511, %v533
        %535 = vmatmul.f32.gmra.mxu0 %v236
        %v536 = vpop.f32.mrf.mxu0
        %v537 = vadd.f32 %v514, %v536
        %538 = vdwg.mxu0
        %539 = vmatpush.msra.mxu0 %v358
        %540 = vmatpush.msra.mxu0 %v350
        %541 = vmatpush.msra.mxu0 %v342
        %542 = vmatpush.msra.mxu0 %v334
        %543 = vmatpush.msra.mxu0 %v326
        %544 = vmatpush.msra.mxu0 %v318
        %545 = vmatpush.msra.mxu0 %v310
        %546 = vmatpush.msra.mxu0 %v302
        %547 = vmatpush.msra.mxu0 %v294
        %548 = vmatpush.msra.mxu0 %v286
        %549 = vmatpush.msra.mxu0 %v278
        %550 = vmatpush.msra.mxu0 %v270
        %551 = vmatpush.msra.mxu0 %v262
        %552 = vmatpush.msra.mxu0 %v254
        %553 = vmatpush.msra.mxu0 %v246
        %554 = vmatpush.msra.mxu0 %v238
        %555 = vmatmul.f32.gmra.mxu0 %v233
        %v556 = vpop.f32.mrf.mxu0
        %v557 = vadd.f32 0.0, %v556
        %558 = vmatmul.f32.gmra.mxu0 %v235
        %v559 = vpop.f32.mrf.mxu0
        %v560 = vadd.f32 0.0, %v559
        %561 = vdwg.mxu0
        %562 = vmatpush.msra.mxu0 %v486
        %563 = vmatpush.msra.mxu0 %v478
        %564 = vmatpush.msra.mxu0 %v470
        %565 = vmatpush.msra.mxu0 %v462
        %566 = vmatpush.msra.mxu0 %v454
        %567 = vmatpush.msra.mxu0 %v446
        %568 = vmatpush.msra.mxu0 %v438
        %569 = vmatpush.msra.mxu0 %v430
        %570 = vmatpush.msra.mxu0 %v422
        %571 = vmatpush.msra.mxu0 %v414
        %572 = vmatpush.msra.mxu0 %v406
        %573 = vmatpush.msra.mxu0 %v398
        %574 = vmatpush.msra.mxu0 %v390
        %575 = vmatpush.msra.mxu0 %v382
        %576 = vmatpush.msra.mxu0 %v374
        %577 = vmatpush.msra.mxu0 %v366
        %578 = vmatmul.f32.gmra.mxu0 %v234
        %v579 = vpop.f32.mrf.mxu0
        %v580 = vadd.f32 %v557, %v579
        %581 = vmatmul.f32.gmra.mxu0 %v236
        %v582 = vpop.f32.mrf.mxu0
        %v583 = vadd.f32 %v560, %v582
        %584 = vdwg.mxu0
        %585 = vmatpush.msra.mxu0 %v359
        %586 = vmatpush.msra.mxu0 %v351
        %587 = vmatpush.msra.mxu0 %v343
        %588 = vmatpush.msra.mxu0 %v335
        %589 = vmatpush.msra.mxu0 %v327
        %590 = vmatpush.msra.mxu0 %v319
        %591 = vmatpush.msra.mxu0 %v311
        %592 = vmatpush.msra.mxu0 %v303
        %593 = vmatpush.msra.mxu0 %v295
        %594 = vmatpush.msra.mxu0 %v287
        %595 = vmatpush.msra.mxu0 %v279
        %596 = vmatpush.msra.mxu0 %v271
        %597 = vmatpush.msra.mxu0 %v263
        %598 = vmatpush.msra.mxu0 %v255
        %599 = vmatpush.msra.mxu0 %v247
        %600 = vmatpush.msra.mxu0 %v239
        %601 = vmatmul.f32.gmra.mxu0 %v233
        %v602 = vpop.f32.mrf.mxu0
        %v603 = vadd.f32 0.0, %v602
        %604 = vmatmul.f32.gmra.mxu0 %v235
        %v605 = vpop.f32.mrf.mxu0
        %v606 = vadd.f32 0.0, %v605
        %607 = vdwg.mxu0
        %608 = vmatpush.msra.mxu0 %v487
        %609 = vmatpush.msra.mxu0 %v479
        %610 = vmatpush.msra.mxu0 %v471
        %611 = vmatpush.msra.mxu0 %v463
        %612 = vmatpush.msra.mxu0 %v455
        %613 = vmatpush.msra.mxu0 %v447
        %614 = vmatpush.msra.mxu0 %v439
        %615 = vmatpush.msra.mxu0 %v431
        %616 = vmatpush.msra.mxu0 %v423
        %617 = vmatpush.msra.mxu0 %v415
        %618 = vmatpush.msra.mxu0 %v407
        %619 = vmatpush.msra.mxu0 %v399
        %620 = vmatpush.msra.mxu0 %v391
        %621 = vmatpush.msra.mxu0 %v383
        %622 = vmatpush.msra.mxu0 %v375
        %623 = vmatpush.msra.mxu0 %v367
        %624 = vmatmul.f32.gmra.mxu0 %v234
        %v625 = vpop.f32.mrf.mxu0
        %v626 = vadd.f32 %v603, %v625
        %627 = vmatmul.f32.gmra.mxu0 %v236
        %v628 = vpop.f32.mrf.mxu0
        %v629 = vadd.f32 %v606, %v628
        %630 = vdwg.mxu0
        %631 = vmatpush.msra.mxu0 %v360
        %632 = vmatpush.msra.mxu0 %v352
        %633 = vmatpush.msra.mxu0 %v344
        %634 = vmatpush.msra.mxu0 %v336
        %635 = vmatpush.msra.mxu0 %v328
        %636 = vmatpush.msra.mxu0 %v320
        %637 = vmatpush.msra.mxu0 %v312
        %638 = vmatpush.msra.mxu0 %v304
        %639 = vmatpush.msra.mxu0 %v296
        %640 = vmatpush.msra.mxu0 %v288
        %641 = vmatpush.msra.mxu0 %v280
        %642 = vmatpush.msra.mxu0 %v272
        %643 = vmatpush.msra.mxu0 %v264
        %644 = vmatpush.msra.mxu0 %v256
        %645 = vmatpush.msra.mxu0 %v248
        %646 = vmatpush.msra.mxu0 %v240
        %647 = vmatmul.f32.gmra.mxu0 %v233
        %v648 = vpop.f32.mrf.mxu0
        %v649 = vadd.f32 0.0, %v648
        %650 = vmatmul.f32.gmra.mxu0 %v235
        %v651 = vpop.f32.mrf.mxu0
        %v652 = vadd.f32 0.0, %v651
        %653 = vdwg.mxu0
        %654 = vmatpush.msra.mxu0 %v488
        %655 = vmatpush.msra.mxu0 %v480
        %656 = vmatpush.msra.mxu0 %v472
        %657 = vmatpush.msra.mxu0 %v464
        %658 = vmatpush.msra.mxu0 %v456
        %659 = vmatpush.msra.mxu0 %v448
        %660 = vmatpush.msra.mxu0 %v440
        %661 = vmatpush.msra.mxu0 %v432
        %662 = vmatpush.msra.mxu0 %v424
        %663 = vmatpush.msra.mxu0 %v416
        %664 = vmatpush.msra.mxu0 %v408
        %665 = vmatpush.msra.mxu0 %v400
        %666 = vmatpush.msra.mxu0 %v392
        %667 = vmatpush.msra.mxu0 %v384
        %668 = vmatpush.msra.mxu0 %v376
        %669 = vmatpush.msra.mxu0 %v368
        %670 = vmatmul.f32.gmra.mxu0 %v234
        %v671 = vpop.f32.mrf.mxu0
        %v672 = vadd.f32 %v649, %v671
        %673 = vmatmul.f32.gmra.mxu0 %v236
        %v674 = vpop.f32.mrf.mxu0
        %v675 = vadd.f32 %v652, %v674
        %676 = vdwg.mxu0
        %677 = vmatpush.msra.mxu0 %v361
        %678 = vmatpush.msra.mxu0 %v353
        %679 = vmatpush.msra.mxu0 %v345
        %680 = vmatpush.msra.mxu0 %v337
        %681 = vmatpush.msra.mxu0 %v329
        %682 = vmatpush.msra.mxu0 %v321
        %683 = vmatpush.msra.mxu0 %v313
        %684 = vmatpush.msra.mxu0 %v305
        %685 = vmatpush.msra.mxu0 %v297
        %686 = vmatpush.msra.mxu0 %v289
        %687 = vmatpush.msra.mxu0 %v281
        %688 = vmatpush.msra.mxu0 %v273
        %689 = vmatpush.msra.mxu0 %v265
        %690 = vmatpush.msra.mxu0 %v257
        %691 = vmatpush.msra.mxu0 %v249
        %692 = vmatpush.msra.mxu0 %v241
        %693 = vmatmul.f32.gmra.mxu0 %v233
        %v694 = vpop.f32.mrf.mxu0
        %v695 = vadd.f32 0.0, %v694
        %696 = vmatmul.f32.gmra.mxu0 %v235
        %v697 = vpop.f32.mrf.mxu0
        %v698 = vadd.f32 0.0, %v697
        %699 = vdwg.mxu0
        %700 = vmatpush.msra.mxu0 %v489
        %701 = vmatpush.msra.mxu0 %v481
        %702 = vmatpush.msra.mxu0 %v473
        %703 = vmatpush.msra.mxu0 %v465
        %704 = vmatpush.msra.mxu0 %v457
        %705 = vmatpush.msra.mxu0 %v449
        %706 = vmatpush.msra.mxu0 %v441
        %707 = vmatpush.msra.mxu0 %v433
        %708 = vmatpush.msra.mxu0 %v425
        %709 = vmatpush.msra.mxu0 %v417
        %710 = vmatpush.msra.mxu0 %v409
        %711 = vmatpush.msra.mxu0 %v401
        %712 = vmatpush.msra.mxu0 %v393
        %713 = vmatpush.msra.mxu0 %v385
        %714 = vmatpush.msra.mxu0 %v377
        %715 = vmatpush.msra.mxu0 %v369
        %716 = vmatmul.f32.gmra.mxu0 %v234
        %v717 = vpop.f32.mrf.mxu0
        %v718 = vadd.f32 %v695, %v717
        %719 = vmatmul.f32.gmra.mxu0 %v236
        %v720 = vpop.f32.mrf.mxu0
        %v721 = vadd.f32 %v698, %v720
        %722 = vdwg.mxu0
        %723 = vmatpush.msra.mxu0 %v362
        %724 = vmatpush.msra.mxu0 %v354
        %725 = vmatpush.msra.mxu0 %v346
        %726 = vmatpush.msra.mxu0 %v338
        %727 = vmatpush.msra.mxu0 %v330
        %728 = vmatpush.msra.mxu0 %v322
        %729 = vmatpush.msra.mxu0 %v314
        %730 = vmatpush.msra.mxu0 %v306
        %731 = vmatpush.msra.mxu0 %v298
        %732 = vmatpush.msra.mxu0 %v290
        %733 = vmatpush.msra.mxu0 %v282
        %734 = vmatpush.msra.mxu0 %v274
        %735 = vmatpush.msra.mxu0 %v266
        %736 = vmatpush.msra.mxu0 %v258
        %737 = vmatpush.msra.mxu0 %v250
        %738 = vmatpush.msra.mxu0 %v242
        %739 = vmatmul.f32.gmra.mxu0 %v233
        %v740 = vpop.f32.mrf.mxu0
        %v741 = vadd.f32 0.0, %v740
        %742 = vmatmul.f32.gmra.mxu0 %v235
        %v743 = vpop.f32.mrf.mxu0
        %v744 = vadd.f32 0.0, %v743
        %745 = vdwg.mxu0
        %746 = vmatpush.msra.mxu0 %v490
        %747 = vmatpush.msra.mxu0 %v482
        %748 = vmatpush.msra.mxu0 %v474
        %749 = vmatpush.msra.mxu0 %v466
        %750 = vmatpush.msra.mxu0 %v458
        %751 = vmatpush.msra.mxu0 %v450
        %752 = vmatpush.msra.mxu0 %v442
        %753 = vmatpush.msra.mxu0 %v434
        %754 = vmatpush.msra.mxu0 %v426
        %755 = vmatpush.msra.mxu0 %v418
        %756 = vmatpush.msra.mxu0 %v410
        %757 = vmatpush.msra.mxu0 %v402
        %758 = vmatpush.msra.mxu0 %v394
        %759 = vmatpush.msra.mxu0 %v386
        %760 = vmatpush.msra.mxu0 %v378
        %761 = vmatpush.msra.mxu0 %v370
        %762 = vmatmul.f32.gmra.mxu0 %v234
        %v763 = vpop.f32.mrf.mxu0
        %v764 = vadd.f32 %v741, %v763
        %765 = vmatmul.f32.gmra.mxu0 %v236
        %v766 = vpop.f32.mrf.mxu0
        %v767 = vadd.f32 %v744, %v766
        %768 = vdwg.mxu0
        %769 = vmatpush.msra.mxu0 %v363
        %770 = vmatpush.msra.mxu0 %v355
        %771 = vmatpush.msra.mxu0 %v347
        %772 = vmatpush.msra.mxu0 %v339
        %773 = vmatpush.msra.mxu0 %v331
        %774 = vmatpush.msra.mxu0 %v323
        %775 = vmatpush.msra.mxu0 %v315
        %776 = vmatpush.msra.mxu0 %v307
        %777 = vmatpush.msra.mxu0 %v299
        %778 = vmatpush.msra.mxu0 %v291
        %779 = vmatpush.msra.mxu0 %v283
        %780 = vmatpush.msra.mxu0 %v275
        %781 = vmatpush.msra.mxu0 %v267
        %782 = vmatpush.msra.mxu0 %v259
        %783 = vmatpush.msra.mxu0 %v251
        %784 = vmatpush.msra.mxu0 %v243
        %785 = vmatmul.f32.gmra.mxu0 %v233
        %v786 = vpop.f32.mrf.mxu0
        %v787 = vadd.f32 0.0, %v786
        %788 = vmatmul.f32.gmra.mxu0 %v235
        %v789 = vpop.f32.mrf.mxu0
        %v790 = vadd.f32 0.0, %v789
        %791 = vdwg.mxu0
        %792 = vmatpush.msra.mxu0 %v491
        %793 = vmatpush.msra.mxu0 %v483
        %794 = vmatpush.msra.mxu0 %v475
        %795 = vmatpush.msra.mxu0 %v467
        %796 = vmatpush.msra.mxu0 %v459
        %797 = vmatpush.msra.mxu0 %v451
        %798 = vmatpush.msra.mxu0 %v443
        %799 = vmatpush.msra.mxu0 %v435
        %800 = vmatpush.msra.mxu0 %v427
        %801 = vmatpush.msra.mxu0 %v419
        %802 = vmatpush.msra.mxu0 %v411
        %803 = vmatpush.msra.mxu0 %v403
        %804 = vmatpush.msra.mxu0 %v395
        %805 = vmatpush.msra.mxu0 %v387
        %806 = vmatpush.msra.mxu0 %v379
        %807 = vmatpush.msra.mxu0 %v371
        %808 = vmatmul.f32.gmra.mxu0 %v234
        %v809 = vpop.f32.mrf.mxu0
        %v810 = vadd.f32 %v787, %v809
        %811 = vmatmul.f32.gmra.mxu0 %v236
        %v812 = vpop.f32.mrf.mxu0
        %v813 = vadd.f32 %v790, %v812
        %814 = vdwg.mxu0
        %815 = vmatpush.msra.mxu0 %v364
        %816 = vmatpush.msra.mxu0 %v356
        %817 = vmatpush.msra.mxu0 %v348
        %818 = vmatpush.msra.mxu0 %v340
        %819 = vmatpush.msra.mxu0 %v332
        %820 = vmatpush.msra.mxu0 %v324
        %821 = vmatpush.msra.mxu0 %v316
        %822 = vmatpush.msra.mxu0 %v308
        %823 = vmatpush.msra.mxu0 %v300
        %824 = vmatpush.msra.mxu0 %v292
        %825 = vmatpush.msra.mxu0 %v284
        %826 = vmatpush.msra.mxu0 %v276
        %827 = vmatpush.msra.mxu0 %v268
        %828 = vmatpush.msra.mxu0 %v260
        %829 = vmatpush.msra.mxu0 %v252
        %830 = vmatpush.msra.mxu0 %v244
        %831 = vmatmul.f32.gmra.mxu0 %v233
        %v832 = vpop.f32.mrf.mxu0
        %v833 = vadd.f32 0.0, %v832
        %834 = vmatmul.f32.gmra.mxu0 %v235
        %v835 = vpop.f32.mrf.mxu0
        %v836 = vadd.f32 0.0, %v835
        %837 = vdwg.mxu0
        %838 = vmatpush.msra.mxu0 %v492
        %839 = vmatpush.msra.mxu0 %v484
        %840 = vmatpush.msra.mxu0 %v476
        %841 = vmatpush.msra.mxu0 %v468
        %842 = vmatpush.msra.mxu0 %v460
        %843 = vmatpush.msra.mxu0 %v452
        %844 = vmatpush.msra.mxu0 %v444
        %845 = vmatpush.msra.mxu0 %v436
        %846 = vmatpush.msra.mxu0 %v428
        %847 = vmatpush.msra.mxu0 %v420
        %848 = vmatpush.msra.mxu0 %v412
        %849 = vmatpush.msra.mxu0 %v404
        %850 = vmatpush.msra.mxu0 %v396
        %851 = vmatpush.msra.mxu0 %v388
        %852 = vmatpush.msra.mxu0 %v380
        %853 = vmatpush.msra.mxu0 %v372
        %854 = vmatmul.f32.gmra.mxu0 %v234
        %v855 = vpop.f32.mrf.mxu0
        %v856 = vadd.f32 %v833, %v855
        %857 = vmatmul.f32.gmra.mxu0 %v236
        %v858 = vpop.f32.mrf.mxu0
        %v859 = vadd.f32 %v836, %v858
        %860 = vdwg.mxu0
        %v861 = vadd.f32 %v217, %v534
        %v862 = vadd.f32 %v218, %v580
        %v863 = vadd.f32 %v219, %v626
        %v864 = vadd.f32 %v220, %v672
        %v865 = vadd.f32 %v221, %v718
        %v866 = vadd.f32 %v222, %v764
        %v867 = vadd.f32 %v223, %v810
        %v868 = vadd.f32 %v224, %v856
        %v869 = vadd.f32 %v225, %v537
        %v870 = vadd.f32 %v226, %v583
        %v871 = vadd.f32 %v227, %v629
        %v872 = vadd.f32 %v228, %v675
        %v873 = vadd.f32 %v229, %v721
        %v874 = vadd.f32 %v230, %v767
        %v875 = vadd.f32 %v231, %v813
        %v876 = vadd.f32 %v232, %v859
        %877 = vst [vmem:[#allocation2] sm:$0xff] %v861
        %878 = vst [vmem:[#allocation2 + $0x8] sm:$0xff] %v862
        %879 = vst [vmem:[#allocation2 + $0x10] sm:$0xff] %v863
        %880 = vst [vmem:[#allocation2 + $0x18] sm:$0xff] %v864
        %881 = vst [vmem:[#allocation2 + $0x20] sm:$0xff] %v865
        %882 = vst [vmem:[#allocation2 + $0x28] sm:$0xff] %v866
        %883 = vst [vmem:[#allocation2 + $0x30] sm:$0xff] %v867
        %884 = vst [vmem:[#allocation2 + $0x38] sm:$0xff] %v868
        %885 = vst [vmem:[#allocation2 + $0x40] sm:$0xff] %v869
        %886 = vst [vmem:[#allocation2 + $0x48] sm:$0xff] %v870
        %887 = vst [vmem:[#allocation2 + $0x50] sm:$0xff] %v871
        %888 = vst [vmem:[#allocation2 + $0x58] sm:$0xff] %v872
        %889 = vst [vmem:[#allocation2 + $0x60] sm:$0xff] %v873
        %890 = vst [vmem:[#allocation2 + $0x68] sm:$0xff] %v874
        %891 = vst [vmem:[#allocation2 + $0x70] sm:$0xff] %v875
        %892 = vst [vmem:[#allocation2 + $0x78] sm:$0xff] %v876
        %p893 = scmp.eq.s32.totalorder %s20, 3
        // Predicated region
        $region41: #{pallas_matmul.1} parent=27 // pred_check
          %p894 = pneg %p893
        $region42: #{pallas_matmul.1} parent=27 // pred_check_branch
          %896 = sbr.rel (%p894) target = $region44
        $region43: #{pallas_matmul.1} parent=27 // pred_region
          %v897 = vld [vmem:[#allocation2] sm:$0xff]
          %v898 = vld [vmem:[#allocation2 + $0x8] sm:$0xff]
          %v899 = vld [vmem:[#allocation2 + $0x10] sm:$0xff]
          %v900 = vld [vmem:[#allocation2 + $0x18] sm:$0xff]
          %v901 = vld [vmem:[#allocation2 + $0x20] sm:$0xff]
          %v902 = vld [vmem:[#allocation2 + $0x28] sm:$0xff]
          %v903 = vld [vmem:[#allocation2 + $0x30] sm:$0xff]
          %v904 = vld [vmem:[#allocation2 + $0x38] sm:$0xff]
          %v905 = vld [vmem:[#allocation2 + $0x40] sm:$0xff]
          %v906 = vld [vmem:[#allocation2 + $0x48] sm:$0xff]
          %v907 = vld [vmem:[#allocation2 + $0x50] sm:$0xff]
          %v908 = vld [vmem:[#allocation2 + $0x58] sm:$0xff]
          %v909 = vld [vmem:[#allocation2 + $0x60] sm:$0xff]
          %v910 = vld [vmem:[#allocation2 + $0x68] sm:$0xff]
          %v911 = vld [vmem:[#allocation2 + $0x70] sm:$0xff]
          %v912 = vld [vmem:[#allocation2 + $0x78] sm:$0xff]
          %913 = vst [vmem:[#allocation8] sm:$0xff] %v897
          %914 = vst [vmem:[#allocation8 + $0x8] sm:$0xff] %v898
          %915 = vst [vmem:[#allocation8 + $0x10] sm:$0xff] %v899
          %916 = vst [vmem:[#allocation8 + $0x18] sm:$0xff] %v900
          %917 = vst [vmem:[#allocation8 + $0x20] sm:$0xff] %v901
          %918 = vst [vmem:[#allocation8 + $0x28] sm:$0xff] %v902
          %919 = vst [vmem:[#allocation8 + $0x30] sm:$0xff] %v903
          %920 = vst [vmem:[#allocation8 + $0x38] sm:$0xff] %v904
          %921 = vst [vmem:[#allocation8 + $0x40] sm:$0xff] %v905
          %922 = vst [vmem:[#allocation8 + $0x48] sm:$0xff] %v906
          %923 = vst [vmem:[#allocation8 + $0x50] sm:$0xff] %v907
          %924 = vst [vmem:[#allocation8 + $0x58] sm:$0xff] %v908
          %925 = vst [vmem:[#allocation8 + $0x60] sm:$0xff] %v909
          %926 = vst [vmem:[#allocation8 + $0x68] sm:$0xff] %v910
          %927 = vst [vmem:[#allocation8 + $0x70] sm:$0xff] %v911
          %928 = vst [vmem:[#allocation8 + $0x78] sm:$0xff] %v912
        $region44: #{pallas_matmul.1} parent=27 // pred_fallthru
          _
        // Predicated region
        $region45: #{pallas_matmul.1} parent=27 // pred_check
          %p929 = pneg %p85
        $region46: #{pallas_matmul.1} parent=27 // pred_check_branch
          %931 = sbr.rel (%p929) target = $region48
        $region47: #{pallas_matmul.1} parent=27 // pred_region
          %933 = vsyncadd [#allocation5], 0
          %s934 = sshll.u32 [#allocation8], 4
          %s935 = int_to_ptr.vmem [resolvable:$true] %s934
          %s936 = sshll.u32 %s2, 4
          %s937 = int_to_ptr.hbm [resolvable:$true] %s936
          %942 = dma.vmem_to_hbm [thread:$0]  %s935, 2048, %s937, [#allocation5], 1024, 1024, 64
        $region48: #{pallas_matmul.1} parent=27 // pred_fallthru
          _
        // Predicated region
        $region49: #{pallas_matmul.1} parent=27 // pred_check
          %p943 = pneg %p85
        $region50: #{pallas_matmul.1} parent=27 // pred_check_branch
          %945 = sbr.rel (%p943) target = $region52
        $region51: #{pallas_matmul.1} parent=27 // pred_region
          %947 = dma.done [#allocation5], 2048
        $region52: #{pallas_matmul.1} parent=27 // pred_fallthru
          _
      $region28: #{pallas_matmul.1} parent=5 // pred_fallthru
        _
      %p948 = scmp.le.s32.totalorder 2, %s15
      // Predicated region
      $region53: #{pallas_matmul.1} parent=5 // pred_check
        %p949 = pneg %p948
      $region54: #{pallas_matmul.1} parent=5 // pred_check_branch
        %951 = sbr.rel (%p949) target = $region56
      $region55: #{pallas_matmul.1} parent=5 // pred_region
        %s952 = ssub.s32 %s15, 2
      $region56: #{pallas_matmul.1} parent=5 // pred_fallthru
        _
    $region6: #{pallas_matmul.1} parent=1 // loop_footer
      %s19 = sadd.s32 1, %s15
    $region7: #{pallas_matmul.1} parent=1 // loop_footer_branch
      %14 = sbr.rel target = $region3
    $region8: #{pallas_matmul.1} parent=1 // loop_exit
      _
    %953 = vsyncpa [#allocation4], 1
    %s954 = scalar_lea.sflag [#allocation4], 1
    %955 = vsyncpa %s954, 1
    %956 = vsyncpa [#allocation7], 1
    %s957 = scalar_lea.sflag [#allocation7], 1
    %958 = vsyncpa %s957, 1
    %959 = vsyncpa [#allocation5], 1
    %s960 = scalar_lea.sflag [#allocation5], 1
    %961 = vsyncpa %s960, 1

</llo_original>
